<compile_context>
chip_gen: v6e
topology: v6e:2x2x1
jax: 0.10.0
libtpu: 0.0.40
codegen_flags: <defaults>
</compile_context>

<pallas_src>
import functools

import jax
import jax.numpy as jnp
from jax.experimental import pallas as pl
from jax.experimental.pallas import tpu as pltpu


_SINGLE_BLOCK_MAX_ROWS = 8192    # <= this: one un-gridded call, whole problem in VMEM
_BATCH_TILE_LANE_DENSE = 16384   # x tile: 16384*128*4 B = 8 MiB; x2 double-buffer = 16 MiB
_BATCH_TILE_COLUMN = 8192        # fallback also double-buffers a (tb,128)-padded out tile


def _cdiv(a: int, b: int) -> int:
    return -(-a // b)


def _round_up(a: int, m: int) -> int:
    return _cdiv(a, m) * m


# ----------------------------------------------------------------------------- kernels


def _linear_kernel_column(x_ref, w_ref, b_ref, o_ref):
    """y[i, 0] = sum_k x[i, k] * w[0, k] + b   (VPU multiply + lane reduce; no MXU)."""
    x = x_ref[...]                                       # (rows, D_in)  VMEM
    w = w_ref[...]                                       # (1,    D_in)  VMEM
    b = b_ref[0, 0]                                      # scalar        SMEM
    y = jnp.sum(x * w, axis=-1, keepdims=True) + b       # (rows, 1) f32
    o_ref[...] = y.astype(o_ref.dtype)


def _linear_kernel_lane_dense(x_ref, w_ref, b_ref, o_ref):
    """Same math, but stores a lane-dense (1, tb) slab instead of a (tb, 1) column."""
    x = x_ref[...]                                       # (tb, D_in)  VMEM
    w = w_ref[...]                                       # (1,  D_in)  VMEM
    b = b_ref[0, 0]                                      # scalar      SMEM
    y_col = jnp.sum(x * w, axis=-1, keepdims=True) + b   # (tb, 1) f32
    # Sublane->lane relayout (XLU) so the store is one unmasked lane-dense write
    # instead of tb/8 masked vst.msk partial stores.
    o_ref[...] = y_col.T.astype(o_ref.dtype)             # (1, tb)


# ------------------------------------------------------------------------ call wrappers


def _single_block_call(x, w, b2d):
    """Whole (small) problem in one un-gridded call: no grid, no pipeline overhead."""
    B, _ = x.shape
    return pl.pallas_call(
        _linear_kernel_column,
        out_shape=jax.ShapeDtypeStruct((B, 1), x.dtype),
        in_specs=[
            pl.BlockSpec(memory_space=pltpu.MemorySpace.VMEM),   # x (whole)
            pl.BlockSpec(memory_space=pltpu.MemorySpace.VMEM),   # weight row (whole)
            pl.BlockSpec(memory_space=pltpu.MemorySpace.SMEM),   # bias scalar
        ],
        out_specs=pl.BlockSpec(memory_space=pltpu.MemorySpace.VMEM),
    )(x, w, b2d)


def _lane_dense_gridded_call(x, w, b2d, tb):
    """Ragged batch grid; kernel writes lane-dense (1, tb) slabs into a (1, n*tb) row."""
    B, D_in = x.shape
    n_tiles = _cdiv(B, tb)
    y_row = pl.pallas_call(
        _linear_kernel_lane_dense,
        out_shape=jax.ShapeDtypeStruct((1, n_tiles * tb), x.dtype),
        grid=(n_tiles,),
        in_specs=[
            pl.BlockSpec((tb, D_in), lambda i: (i, 0)),          # x tile (tail may OOB-read)
            pl.BlockSpec(memory_space=pltpu.MemorySpace.VMEM),   # weight row, resident
            pl.BlockSpec(memory_space=pltpu.MemorySpace.SMEM),   # bias scalar, resident
        ],
        out_specs=pl.BlockSpec((1, tb), lambda i: (0, i)),
        compiler_params=pltpu.CompilerParams(
            dimension_semantics=("parallel",),   # >=2 steps -> v7x shards over both TCs
        ),
    )(x, w, b2d)
    # (1, n*tb) -> (B, 1).  Reshape is free; the slice copies only B*4 bytes (tail garbage
    # from the ragged last block is discarded here).
    return y_row.reshape(n_tiles * tb, 1)[:B]


def _column_gridded_call(x, w, b2d, tb):
    """Fallback path: ragged batch grid with the proven (tb, 1) column store."""
    B, D_in = x.shape
    n_tiles = _cdiv(B, tb)
    return pl.pallas_call(
        _linear_kernel_column,
        out_shape=jax.ShapeDtypeStruct((B, 1), x.dtype),
        grid=(n_tiles,),
        in_specs=[
            pl.BlockSpec((tb, D_in), lambda i: (i, 0)),          # x tile (tail may OOB-read)
            pl.BlockSpec(memory_space=pltpu.MemorySpace.VMEM),   # weight row, resident
            pl.BlockSpec(memory_space=pltpu.MemorySpace.SMEM),   # bias scalar, resident
        ],
        out_specs=pl.BlockSpec((tb, 1), lambda i: (i, 0)),       # tail OOB writes are masked
        compiler_params=pltpu.CompilerParams(
            dimension_semantics=("parallel",),
        ),
    )(x, w, b2d)


@functools.cache
def _lane_dense_supported() -> bool:
    """One-time probe: does the (tb,1)->(1,tb) sublane->lane relayout lower correctly on
    this Mosaic version?  If not, use the column-store kernel."""
    try:
        d_in, b_rows, tb = 10, 256, 128
        xs = (jnp.arange(b_rows * d_in, dtype=jnp.float32).reshape(b_rows, d_in) % 7.0) - 3.0
        ws = jnp.linspace(-0.5, 0.5, d_in, dtype=jnp.float32).reshape(1, d_in)
        bs = jnp.full((1, 1), 0.25, dtype=jnp.float32)
        got = _lane_dense_gridded_call(xs, ws, bs, tb)
        ref = xs @ ws.T + 0.25
        return bool(jnp.allclose(got, ref, atol=1e-4, rtol=1e-4))
    except Exception:
        return False


def simple_linear(x, weight, bias):
    """y = x @ weight.T + bias, matching torch.nn.Linear semantics.

    x:      (B, D_in)      float32
    weight: (D_out, D_in)  float32   (native PyTorch layout, NOT transposed)
    bias:   (D_out,)       float32
    returns (B, D_out)     float32
    """
    B, D_in = x.shape
    D_out, d_in_w = weight.shape
    assert d_in_w == D_in
    # The VPU broadcast/reduce formulation is specialised to this module's output_dim == 1.
    # TODO(synk): generalise to output_dim > 1 with an MXU (tb, D_in)x(D_in, D_out) tile.
    assert D_out == 1, "simple_linear kernel is specialised to output_dim == 1"

    w = weight.astype(x.dtype)
    b2d = bias.reshape(1, 1).astype(x.dtype)             # scalar bias -> SMEM block

    if B <= _SINGLE_BLOCK_MAX_ROWS:
        return _single_block_call(x, w, b2d)

    if _lane_dense_supported():
        # Cap the tile so there are always >= 2 grid steps (v7x 2-TC sharding) and so the
        # double-buffered, lane-padded x tiles stay well under the 32 MiB scoped VMEM.
        tb = min(_BATCH_TILE_LANE_DENSE, _round_up(_cdiv(B, 2), 128))
        try:
            return _lane_dense_gridded_call(x, w, b2d, tb)
        except Exception:
            pass  # size-specific lowering failure: fall back to the column kernel below

    tb = min(_BATCH_TILE_COLUMN, _round_up(_cdiv(B, 2), 8))
    return _column_gridded_call(x, w, b2d, tb)


if __name__ == "__main__":
    input_dim, output_dim = 10, 1

    key = jax.random.PRNGKey(0)
    k_w, k_b, k_x_small, k_x_large = jax.random.split(key, 4)

    # Deterministic init mimicking torch.nn.Linear's U(-1/sqrt(fan_in), 1/sqrt(fan_in)).
    bound = float(1.0 / (input_dim ** 0.5))
    weight = jax.random.uniform(k_w, (output_dim, input_dim), jnp.float32, -bound, bound)
    bias = jax.random.uniform(k_b, (output_dim,), jnp.float32, -bound, bound)

    # Small batch: exercises the gridless single-block path.
    x_small = jax.random.normal(k_x_small, (8, input_dim), jnp.float32)
    y_small = simple_linear(x_small, weight, bias)
    jax.block_until_ready(y_small)
    assert y_small.shape == (8, output_dim)
    assert jnp.allclose(y_small, x_small @ weight.T + bias, atol=1e-5, rtol=1e-5)

    # Larger, non-tile-divisible batch: exercises the ragged cdiv grid (2 "parallel" steps)
    # and the lane-dense output path (or the column fallback if the relayout probe fails).
    B_large = 2 * 8192 + 37
    x_large = jax.random.normal(k_x_large, (B_large, input_dim), jnp.float32)
    y_large = simple_linear(x_large, weight, bias)
    jax.block_until_ready(y_large)
    assert y_large.shape == (B_large, output_dim)
    assert jnp.allclose(y_large, x_large @ weight.T + bias, atol=1e-5, rtol=1e-5)

    print("KERNEL_OK")
</pallas_src>

<mosaic_0001>
module attributes {stable_mosaic.version = 11 : i64} {
  func.func @_linear_kernel_column(%arg0: memref<8x10xf32, #tpu.memory_space<vmem>>, %arg1: memref<1x10xf32, #tpu.memory_space<vmem>>, %arg2: memref<1x1xf32, #tpu.memory_space<smem>>, %arg3: memref<8x1xf32, #tpu.memory_space<vmem>>) attributes {dimension_semantics = [], scalar_prefetch = 0 : i64, scratch_operands = 0 : i64, tpu.core_type = #tpu.core_type<tc>} {
    %c0 = arith.constant 0 : index
    %c0_0 = arith.constant 0 : index
    %0 = vector.load %arg0[%c0, %c0_0] : memref<8x10xf32, #tpu.memory_space<vmem>>, vector<8x10xf32>
    %c0_1 = arith.constant 0 : index
    %c0_2 = arith.constant 0 : index
    %1 = vector.load %arg1[%c0_1, %c0_2] : memref<1x10xf32, #tpu.memory_space<vmem>>, vector<1x10xf32>
    %c0_3 = arith.constant 0 : index
    %c0_4 = arith.constant 0 : index
    %2 = memref.load %arg2[%c0_3, %c0_4] : memref<1x1xf32, #tpu.memory_space<smem>>
    %3 = vector.broadcast %1 : vector<1x10xf32> to vector<8x10xf32>
    %4 = arith.mulf %0, %3 : vector<8x10xf32>
    %cst = arith.constant dense<0.000000e+00> : vector<8xf32>
    %5 = vector.multi_reduction <add>, %4, %cst [1] : vector<8x10xf32> to vector<8xf32>
    %6 = vector.shape_cast %5 : vector<8xf32> to vector<8x1xf32>
    %7 = vector.broadcast %2 : f32 to vector<8x1xf32>
    %8 = arith.addf %6, %7 : vector<8x1xf32>
    %c0_5 = arith.constant 0 : index
    %c0_6 = arith.constant 0 : index
    %9 = vector.load %arg3[%c0_5, %c0_6] : memref<8x1xf32, #tpu.memory_space<vmem>>, vector<8x1xf32>
    tpu.vector_store %arg3[%c0_5, %c0_6], %8 {strides = array<i32>} : memref<8x1xf32, #tpu.memory_space<vmem>>, vector<8x1xf32>,
    return
  }
}

</mosaic_0001>

<llo_original>
// kernel: tpu_custom_call.1
$region0: #{tpu_custom_call.1}
  #allocation0 [shape = 'u32[]', space=smem, size = 0x4, offset = 0x4, fixed_abs, tag = 'smem constant byte address 0x4 - core index']
  #allocation1 [shape = 'u32[144,128]{1,0:T(1,128)}', space=vmem, size = 0x12000, scoped, tag = 'internal scratch']
  #allocation2 [shape = 'f32[1,1]{1,0:T(1,128)S(6)}', space=smem, size = 0x200, scoped, tag = 'scoped memory for tpu_custom_call.1']
  %s0 = inlined_call_operand.hbm [shape: f32[8,10], index: 0, kind: input, shape index: {}]
  %s1 = inlined_call_operand.vmem [shape: f32[1,10], index: 1, kind: input, shape index: {}]
  %s2 = inlined_call_operand.<no memory space> [shape: f32[1,1], index: 2, kind: input, shape index: {}]
  %s3 = inlined_call_operand.vmem [shape: f32[8,1], index: 3, kind: output, shape index: {}]
  %s4 = sld [smem:[#allocation0]]
  $region26: #{tpu_custom_call.1} parent=0
    _
  %s6 = ssub.s32 1, %s4
  %s7 = scalar_select 0, %s6, %s4
  %8 = sst [smem:[#allocation2]] %s2
  $region1: #{tpu_custom_call.1} parent=0
    #allocation3 [shape = 'u8[4096]{0}', space=vmem, size = 0x1000, scoped, tag = 'input window, operand 0, single buffered']
    #allocation4 [shape = 's32[1]{0}', space=sflag, size = 0x4, scoped, tag = 'scoped memory for tpu_custom_call.1']
    %9 = vsyncpa [#allocation4], 0
    // Predicated region
    $region2: #{tpu_custom_call.1} parent=1 // pred_check
      _
    $region3: #{tpu_custom_call.1} parent=1 // pred_check_branch
      %11 = sbr.rel (0) target = $region5
    $region4: #{tpu_custom_call.1} parent=1 // pred_region
      %s13 = ssub.s32 128, 128
      %14 = vsyncadd [#allocation4], %s13
      %s16 = sshll.u32 [#allocation3], 4
      %s17 = int_to_ptr.vmem [resolvable:$true] %s16
      %19 = dma.hbm_to_vmem [thread:$0]  %s0, 128, %s17, [#allocation4]
    $region5: #{tpu_custom_call.1} parent=1 // pred_fallthru
      _
    // Predicated region
    $region6: #{tpu_custom_call.1} parent=1 // pred_check
      _
    $region7: #{tpu_custom_call.1} parent=1 // pred_check_branch
      %21 = sbr.rel (0) target = $region9
    $region8: #{tpu_custom_call.1} parent=1 // pred_region
      _
    $region9: #{tpu_custom_call.1} parent=1 // pred_fallthru
      _
    // Predicated region
    $region10: #{tpu_custom_call.1} parent=1 // pred_check
      _
    $region11: #{tpu_custom_call.1} parent=1 // pred_check_branch
      %23 = sbr.rel (0) target = $region13
    $region12: #{tpu_custom_call.1} parent=1 // pred_region
      _
    $region13: #{tpu_custom_call.1} parent=1 // pred_fallthru
      _
    // Predicated region
    $region14: #{tpu_custom_call.1} parent=1 // pred_check
      _
    $region15: #{tpu_custom_call.1} parent=1 // pred_check_branch
      %25 = sbr.rel (0) target = $region17
    $region16: #{tpu_custom_call.1} parent=1 // pred_region
      %26 = dma.done [#allocation4], 128
    $region17: #{tpu_custom_call.1} parent=1 // pred_fallthru
      _
    %v27 = vld [vmem:[#allocation3] sm:$0xff]
    %v28 = vld [vmem:[%s1] sm:$0x1]
    %s29 = sld [smem:[#allocation2]]
    %v31 = vlaneseq
    %v32 = vshrl.u32 %v31, 7
    %v33 = vsub.s32 0, %v32
    %v34 = vrot.slane %v28, %v33
    %v36 = vmul.f32 %v27, %v34
    %vm37 = vcmask 80896
    %v38 = vsel %vm37, %v36, 0.0
    %39 = vadd.xlane.f32.xlu0 %v38
    %v40 = vpop.xlane.xlu0 %39
    %v41 = vstv %s29
    %v42 = vadd.f32 %v40, %v41
    %vm43 = vcmask 7168
    %44 = vst.msk [vmem:[%s3] sm:$0xff] %vm43, %v42
    // Predicated region
    $region18: #{tpu_custom_call.1} parent=1 // pred_check
      _
    $region19: #{tpu_custom_call.1} parent=1 // pred_check_branch
      %46 = sbr.rel (0) target = $region21
    $region20: #{tpu_custom_call.1} parent=1 // pred_region
      _
    $region21: #{tpu_custom_call.1} parent=1 // pred_fallthru
      _
    // Predicated region
    $region22: #{tpu_custom_call.1} parent=1 // pred_check
      _
    $region23: #{tpu_custom_call.1} parent=1 // pred_check_branch
      %48 = sbr.rel (0) target = $region25
    $region24: #{tpu_custom_call.1} parent=1 // pred_region
      _
    $region25: #{tpu_custom_call.1} parent=1 // pred_fallthru
      _
    %49 = vsyncpa [#allocation4], 1

</llo_original>
